<compile_context>
chip_gen: v7x
topology: tpu7x:2x2x1
jax: 0.10.0
libtpu: 0.0.40
codegen_flags: <defaults>
</compile_context>

<pallas_src>
import jax
import jax.numpy as jnp
from jax.experimental import pallas as pl
from jax.experimental.pallas import tpu as pltpu


# ----------------------------------------------------------------------------- kernel


def _add_pe_kernel(x_ref, pe_ref, o_ref):
    # x block (tb, tc, ts) + pe block (1, tc, ts): f32 add, broadcast over batch tile.
    o_ref[...] = (x_ref[...].astype(jnp.float32) + pe_ref[...]).astype(o_ref.dtype)


# ----------------------------------------------------------------------------- PE table


def _generate_pe(embed_dim, h, w):
    """Exactly mirrors PositionalEncoding2D.generate_pe (kept in f32)."""
    assert embed_dim % 2 == 0, "PositionalEncoding2D requires an even embed_dim"
    y_pos = jnp.arange(h, dtype=jnp.float32)[:, None]                  # (H, 1)
    x_pos = jnp.arange(w, dtype=jnp.float32)[None, :]                  # (1, W)
    div = jnp.exp(jnp.arange(0, embed_dim, 2, dtype=jnp.float32)
                  * (-jnp.log(jnp.float32(10000.0)) / embed_dim))      # (E/2,)
    div = div[:, None, None]                                           # (E/2, 1, 1)
    pe_x = jnp.sin(x_pos[None, :, :] * div)                            # (E/2, 1, W)
    pe_y = jnp.sin(y_pos[None, :, :] * div)                            # (E/2, H, 1)
    pe = jnp.zeros((embed_dim, h, w), jnp.float32)
    pe = pe.at[0::2].set(jnp.broadcast_to(pe_x, (embed_dim // 2, h, w)))
    pe = pe.at[1::2].set(jnp.broadcast_to(pe_y, (embed_dim // 2, h, w)))
    return pe


# ----------------------------------------------------------------------------- wrapper


def positional_encoding_2d(x, *, max_block_bytes=4 * 1024 * 1024):
    """x: (B, C, H, W) with C == embed_dim (even). Returns x + pe (pe broadcast over B)."""
    b, c, h, w = x.shape
    hw = h * w
    itemsize = x.dtype.itemsize

    # Lane-dense view: last dim = H*W maps to lanes.
    x3 = x.reshape(b, c, hw)
    pe3 = _generate_pe(c, h, w).reshape(1, c, hw)          # f32, batch-invariant

    # Byte-budgeted tiles.  Budget each stream as if f32 so the f32 PE stream and the
    # x/out streams all stay <= max_block_bytes regardless of x.dtype.
    max_elems = max(1, max_block_bytes // 4)

    # dtype-aware sublane multiple for the second-to-last (channel) dim.
    sublane = {4: 8, 2: 16, 1: 32}.get(itemsize, 8)

    # 1) Lane tile: full H*W if it fits, else the largest multiple of 128 in budget.
    if hw <= max_elems:
        tile_hw = hw
    else:
        tile_hw = max(128, (max_elems // 128) * 128)

    # 2) Channel tile: full C if (C, tile_hw) fits, else a sublane multiple (never > C).
    max_c = max(1, max_elems // tile_hw)
    if c <= max_c:
        tile_c = c
    else:
        tile_c = min(c, max(sublane, (max_c // sublane) * sublane))

    # 3) Batch tile: only when a whole (C, H*W) slab fits -> amortize per-step overhead
    #    for small feature maps and keep PE fully resident for the entire kernel.
    if tile_c == c and tile_hw == hw:
        tb = max(1, min(b, max_elems // max(c * hw, 1)))
    else:
        tb = 1

    # Batch innermost so the PE block (index_map constant along batch) stays resident.
    grid = (pl.cdiv(c, tile_c), pl.cdiv(hw, tile_hw), pl.cdiv(b, tb))

    out = pl.pallas_call(
        _add_pe_kernel,
        out_shape=jax.ShapeDtypeStruct((b, c, hw), x.dtype),
        grid_spec=pltpu.PrefetchScalarGridSpec(
            num_scalar_prefetch=0,
            grid=grid,
            in_specs=[
                pl.BlockSpec((tb, tile_c, tile_hw), lambda ci, si, bi: (bi, ci, si)),
                pl.BlockSpec((1, tile_c, tile_hw), lambda ci, si, bi: (0, ci, si)),
            ],
            out_specs=pl.BlockSpec((tb, tile_c, tile_hw),
                                   lambda ci, si, bi: (bi, ci, si)),
        ),
        compiler_params=pltpu.CompilerParams(
            dimension_semantics=("parallel", "parallel", "parallel"),
            vmem_limit_bytes=32 * 1024 * 1024,
        ),
        cost_estimate=pl.CostEstimate(
            flops=b * c * hw,
            transcendentals=0,
            bytes_accessed=2 * b * c * hw * itemsize + c * hw * 4,
        ),
        input_output_aliases={0: 0},  # out = x + pe updates x's buffer in place
    )(x3, pe3)

    return out.reshape(b, c, h, w)


# ----------------------------------------------------------------------------- reference


def _reference(x):
    """Pure-JAX reference mirroring the PyTorch module (pe f32, add, cast back)."""
    b, c, h, w = x.shape
    pe = _generate_pe(c, h, w)
    return (x.astype(jnp.float32) + pe[None]).astype(x.dtype)


# ----------------------------------------------------------------------------- test


if __name__ == "__main__":
    key = jax.random.PRNGKey(0)
    B, C, H, W = 2, 4, 16, 16          # embed_dim = C = 4
    x = jax.random.normal(key, (B, C, H, W), dtype=jnp.float32)

    out = positional_encoding_2d(x)
    out = jax.block_until_ready(out)

    ref = _reference(x)
    assert out.shape == ref.shape and out.dtype == ref.dtype
    assert jnp.allclose(out, ref, atol=1e-5, rtol=1e-5), "mismatch vs reference"

    print("KERNEL_OK")
</pallas_src>

<mosaic_0001>
module attributes {stable_mosaic.version = 11 : i64} {
  func.func @_add_pe_kernel(%arg0: i32, %arg1: i32, %arg2: i32, %arg3: memref<2x4x256xf32, #tpu.memory_space<vmem>>, %arg4: memref<1x4x256xf32, #tpu.memory_space<vmem>>, %arg5: memref<2x4x256xf32, #tpu.memory_space<vmem>>) attributes {dimension_semantics = [#tpu.dimension_semantics<parallel>, #tpu.dimension_semantics<parallel>, #tpu.dimension_semantics<parallel>], iteration_bounds = array<i64: 1, 1, 1>, scalar_prefetch = 0 : i64, scratch_operands = 0 : i64, tpu.core_type = #tpu.core_type<tc>, window_params = [{transform_indices = @transform_0, window_bounds = array<i64: 2, 4, 256>}, {transform_indices = @transform_1, window_bounds = array<i64: 1, 4, 256>}, {transform_indices = @transform_2, window_bounds = array<i64: 2, 4, 256>}]} {
    %c0 = arith.constant 0 : index
    %c0_0 = arith.constant 0 : index
    %c0_1 = arith.constant 0 : index
    %0 = vector.load %arg3[%c0, %c0_0, %c0_1] : memref<2x4x256xf32, #tpu.memory_space<vmem>>, vector<2x4x256xf32>
    %c0_2 = arith.constant 0 : index
    %c0_3 = arith.constant 0 : index
    %c0_4 = arith.constant 0 : index
    %1 = vector.load %arg4[%c0_2, %c0_3, %c0_4] : memref<1x4x256xf32, #tpu.memory_space<vmem>>, vector<1x4x256xf32>
    %2 = vector.broadcast %1 : vector<1x4x256xf32> to vector<2x4x256xf32>
    %3 = arith.addf %0, %2 : vector<2x4x256xf32>
    %c0_5 = arith.constant 0 : index
    %c0_6 = arith.constant 0 : index
    %c0_7 = arith.constant 0 : index
    %4 = vector.load %arg5[%c0_5, %c0_6, %c0_7] : memref<2x4x256xf32, #tpu.memory_space<vmem>>, vector<2x4x256xf32>
    tpu.vector_store %arg5[%c0_5, %c0_6, %c0_7], %3 {strides = array<i32>} : memref<2x4x256xf32, #tpu.memory_space<vmem>>, vector<2x4x256xf32>,
    return
  }
  func.func @transform_0(%arg0: i32, %arg1: i32, %arg2: i32) -> (i32, i32, i32) {
    %c0_i32 = arith.constant 0 : i32
    return %arg2, %arg0, %arg1 : i32, i32, i32
  }
  func.func @transform_1(%arg0: i32, %arg1: i32, %arg2: i32) -> (i32, i32, i32) {
    %c0_i32 = arith.constant 0 : i32
    %c0_i32_0 = arith.constant 0 : i32
    return %c0_i32, %arg0, %arg1 : i32, i32, i32
  }
  func.func @transform_2(%arg0: i32, %arg1: i32, %arg2: i32) -> (i32, i32, i32) {
    %c0_i32 = arith.constant 0 : i32
    return %arg2, %arg0, %arg1 : i32, i32, i32
  }
}

</mosaic_0001>

<llo_original>
// kernel: tpu_custom_call.1
$region0: #{tpu_custom_call.1}
  #allocation0 [shape = 'u32[]', space=smem, size = 0x4, offset = 0x4, fixed_abs, tag = 'smem constant byte address 0x4 - core index']
  #allocation1 [shape = 'u32[144,128]{1,0:T(1,128)}', space=vmem, size = 0x12000, scoped, tag = 'internal scratch']
  %s0 = inlined_call_operand.hbm [shape: f32[2,4,256], index: 0, kind: input, shape index: {}, may-alias: {0,2}]
  %s1 = inlined_call_operand.vmem [shape: f32[1,4,256], index: 1, kind: input, shape index: {}]
  %s2 = inlined_call_operand.hbm [shape: f32[2,4,256], index: 2, kind: output, shape index: {}, may-alias: {0,2}]
  %s3 = sld [smem:[#allocation0]]
  $region22: #{tpu_custom_call.1} parent=0
    _
  %s5 = ssub.s32 1, %s3
  %s6 = scalar_select 0, %s5, %s3
  $region1: #{tpu_custom_call.1} parent=0
    #allocation2 [shape = 'u8[8192]{0}', space=vmem, size = 0x2000, scoped, tag = 'input window, operand 0, single buffered']
    #allocation3 [shape = 's32[1]{0}', space=sflag, size = 0x4, scoped, tag = 'scoped memory for tpu_custom_call.1']
    #allocation4 [shape = 's32[1]{0}', space=sflag, size = 0x4, scoped, tag = 'scoped memory for tpu_custom_call.1']
    #allocation5 [shape = 'u8[8192]{0}', space=vmem, size = 0x2000, scoped, tag = 'output window, operand 0, single buffered']
    %7 = vsyncpa [#allocation3], 0
    %8 = vsyncpa [#allocation4], 0
    // Predicated region
    $region2: #{tpu_custom_call.1} parent=1 // pred_check
      _
    $region3: #{tpu_custom_call.1} parent=1 // pred_check_branch
      %10 = sbr.rel (0) target = $region5
    $region4: #{tpu_custom_call.1} parent=1 // pred_region
      %s12 = ssub.s32 256, 256
      %13 = vsyncadd [#allocation3], %s12
      %s14 = sshll.u32 [#allocation2], 4
      %s15 = int_to_ptr.vmem [resolvable:$true] %s14
      %20 = dma.hbm_to_vmem [thread:$0]  %s0, 256, %s15, [#allocation3], 128, 128, 8
    $region5: #{tpu_custom_call.1} parent=1 // pred_fallthru
      _
    // Predicated region
    $region6: #{tpu_custom_call.1} parent=1 // pred_check
      _
    $region7: #{tpu_custom_call.1} parent=1 // pred_check_branch
      %22 = sbr.rel (0) target = $region9
    $region8: #{tpu_custom_call.1} parent=1 // pred_region
      _
    $region9: #{tpu_custom_call.1} parent=1 // pred_fallthru
      _
    // Predicated region
    $region10: #{tpu_custom_call.1} parent=1 // pred_check
      _
    $region11: #{tpu_custom_call.1} parent=1 // pred_check_branch
      %24 = sbr.rel (0) target = $region13
    $region12: #{tpu_custom_call.1} parent=1 // pred_region
      %25 = dma.done [#allocation3], 256
    $region13: #{tpu_custom_call.1} parent=1 // pred_fallthru
      _
    %v26 = vld [vmem:[#allocation2] sm:$0xff]
    %v27 = vld [vmem:[#allocation2 + $0x8] sm:$0xff]
    %v28 = vld [vmem:[%s1] sm:$0xff]
    %v29 = vadd.f32 %v26, %v28
    %v30 = vadd.f32 %v27, %v28
    %31 = vst [vmem:[#allocation5] sm:$0xff] %v29
    %32 = vst [vmem:[#allocation5 + $0x8] sm:$0xff] %v30
    // Predicated region
    $region14: #{tpu_custom_call.1} parent=1 // pred_check
      _
    $region15: #{tpu_custom_call.1} parent=1 // pred_check_branch
      %34 = sbr.rel (0) target = $region17
    $region16: #{tpu_custom_call.1} parent=1 // pred_region
      %s36 = ssub.s32 256, 256
      %37 = vsyncadd [#allocation4], %s36
      %s38 = sshll.u32 [#allocation5], 4
      %s39 = int_to_ptr.vmem [resolvable:$true] %s38
      %44 = dma.vmem_to_hbm [thread:$0]  %s39, 256, %s2, [#allocation4], 128, 128, 8
    $region17: #{tpu_custom_call.1} parent=1 // pred_fallthru
      _
    // Predicated region
    $region18: #{tpu_custom_call.1} parent=1 // pred_check
      _
    $region19: #{tpu_custom_call.1} parent=1 // pred_check_branch
      %46 = sbr.rel (0) target = $region21
    $region20: #{tpu_custom_call.1} parent=1 // pred_region
      %47 = dma.done [#allocation4], 256
    $region21: #{tpu_custom_call.1} parent=1 // pred_fallthru
      _
    %48 = vsyncpa [#allocation3], 1
    %49 = vsyncpa [#allocation4], 1

</llo_original>
